<compile_context>
chip_gen: v5e
topology: v5e:2x2
jax: 0.10.0
libtpu: 0.0.40
codegen_flags: <defaults>
</compile_context>

<pallas_src>
import jax
import jax.numpy as jnp
from jax.experimental import pallas as pl
from jax.experimental.pallas import tpu as pltpu


def _cdiv(a, b):
    return -(-a // b)


# ---------------------------------------------------------------------------
# Single-pass kernel: whole (bt, C, HW) block resident -> pool, excite, scale.
# ---------------------------------------------------------------------------
def _se_kernel(x_ref, w1_ref, w2_ref, o_ref):
    x = x_ref[...]                                       # (bt, C, HW)
    # Squeeze: spatial sum accumulated in f32 (the upcast fuses into the
    # reduction; no f32 copy of the block is materialized on a bf16 path).
    pooled = jnp.sum(x, axis=-1, dtype=jnp.float32)      # (bt, C)
    # Excitation (1/HW of the mean already folded into w1 by the wrapper).
    h = jnp.dot(pooled, w1_ref[...], preferred_element_type=jnp.float32)
    h = jnp.maximum(h, 0.0)
    s = jnp.dot(h, w2_ref[...], preferred_element_type=jnp.float32)
    s = jax.nn.sigmoid(s)                                # (bt, C)
    # Scale: broadcast the per-(b, c) gate across the HW lanes.
    o_ref[...] = x * s.astype(x.dtype)[:, :, None]


# ---------------------------------------------------------------------------
# Two-pass fallback kernels (HW chunked) for blocks that don't fit VMEM.
# ---------------------------------------------------------------------------
def _pool_kernel(x_ref, pooled_ref):
    # Accumulate spatial sums across HW chunks (reduction axis is last in the
    # grid; output block index is invariant in it).
    @pl.when(pl.program_id(1) == 0)
    def _():
        pooled_ref[...] = jnp.zeros_like(pooled_ref)
    pooled_ref[...] += jnp.sum(x_ref[...], axis=-1,
                               dtype=jnp.float32)[:, :, None]   # (1, C, 1)


def _excite_kernel(pooled_ref, w1_ref, w2_ref, s_ref):
    h = jnp.dot(pooled_ref[...], w1_ref[...], preferred_element_type=jnp.float32)
    h = jnp.maximum(h, 0.0)
    s = jnp.dot(h, w2_ref[...], preferred_element_type=jnp.float32)
    s_ref[...] = jax.nn.sigmoid(s)                       # (B, C)


def _scale_kernel(x_ref, s_ref, o_ref):
    x = x_ref[...]                                       # (1, C, hw_tile)
    o_ref[...] = x * s_ref[...].astype(x.dtype)          # (1, C, 1) broadcast


# ---------------------------------------------------------------------------
# Capacity planning
# ---------------------------------------------------------------------------
def _vmem_limit_bytes():
    """Generation-aware scoped-VMEM limit (bytes)."""
    phys = 0
    try:
        phys = int(pltpu.get_tpu_info().vmem_capacity_bytes)
    except Exception:
        phys = 0
    if phys <= 0:
        phys = 64 * 1024 * 1024        # conservative default (v7x per-core)
    # 3/4 of physical, capped: ~48 MiB on v7x (64 MiB), 96 MiB on v5e/v6e (128 MiB).
    return int(min(phys * 3 // 4, 96 * 1024 * 1024))


def _choose_batch_tiling(B, per_batch_bytes, budget_bytes):
    """Pick (bt, num_tiles, padded_B) for the single-pass path.

    Goals: (a) double-buffered in+out blocks fit `budget_bytes`,
    (b) >= 2 grid steps when B > 1 so DMA pipelines with compute/writeback,
    (c) ~4 tiles when blocks stay >= 1 MiB (amortizes ~0.35us/step) and a
        roughly even tile count (v7x megacore),
    (d) prefer an exact divisor of B (avoids an HBM padding copy of x).
    """
    if B == 1:
        return 1, 1, 1
    # 2x in + 2x out double buffers plus slack for temporaries -> divide by 5.
    max_bt = max(1, budget_bytes // (5 * per_batch_bytes))
    bt = min(max_bt, _cdiv(B, 2))                        # at least 2 tiles
    if _cdiv(B, 4) * per_batch_bytes >= (1 << 20):
        bt = min(bt, _cdiv(B, 4))                        # ~4 tiles if blocks >= 1 MiB
    bt = max(bt, 1)
    # Prefer a nearby exact divisor of B (within 2x of the target tile size).
    for d in range(bt, 0, -1):
        if B % d == 0 and 2 * d >= bt:
            bt = d
            break
    num_tiles = _cdiv(B, bt)
    return bt, num_tiles, bt * num_tiles


# ---------------------------------------------------------------------------
# Wrapper
# ---------------------------------------------------------------------------
def se_layer(x, w1, w2, *, force_two_pass=False, hw_block=None):
    """x: (B, C, H, W); w1: (C, C//r); w2: (C//r, C).  Returns (B, C, H, W)."""
    B, C, H, W = x.shape
    HW = H * W
    Cr = w1.shape[1]
    itemsize = x.dtype.itemsize

    x_flat = x.reshape(B, C, HW)
    # Fold the 1/HW mean normalization into the bias-free first Linear.
    w1_scaled = w1.astype(jnp.float32) * (1.0 / HW)
    w2f = w2.astype(jnp.float32)

    vmem_limit = _vmem_limit_bytes()
    weight_bytes = 4 * (w1_scaled.size + w2f.size)
    # Budget for the pipelined x/out blocks: limit minus (double-buffered)
    # weight blocks minus compiler headroom.
    budget = max(4 << 20, vmem_limit - 2 * weight_bytes - (2 << 20))

    per_batch_bytes = C * HW * itemsize
    needs_two_pass = force_two_pass or (5 * per_batch_bytes > budget)

    if not needs_two_pass:
        # ------------------ single-pass path (one fused kernel) -------------
        bt, num_tiles, Bp = _choose_batch_tiling(B, per_batch_bytes, budget)
        if Bp != B:
            x_flat = jnp.pad(x_flat, ((0, Bp - B), (0, 0), (0, 0)))
        # NOTE: if measurements show exposed DMA, pipeline_mode=pl.Buffered(3)
        # on the x in_spec is the next knob to sweep.
        out_flat = pl.pallas_call(
            _se_kernel,
            out_shape=jax.ShapeDtypeStruct((Bp, C, HW), x.dtype),
            grid_spec=pltpu.PrefetchScalarGridSpec(
                num_scalar_prefetch=0,
                grid=(num_tiles,),
                in_specs=[
                    pl.BlockSpec((bt, C, HW), lambda i: (i, 0, 0)),
                    pl.BlockSpec((C, Cr), lambda i: (0, 0)),
                    pl.BlockSpec((Cr, C), lambda i: (0, 0)),
                ],
                out_specs=pl.BlockSpec((bt, C, HW), lambda i: (i, 0, 0)),
            ),
            compiler_params=pltpu.CompilerParams(
                dimension_semantics=("parallel",),
                vmem_limit_bytes=vmem_limit,
            ),
        )(x_flat, w1_scaled, w2f)
        if Bp != B:
            out_flat = out_flat[:B]
        return out_flat.reshape(B, C, H, W)

    # ---------------- two-pass fallback: grid over HW chunks ----------------
    # bt = 1 here (a single batch row already exceeds the budget, or forced).
    if hw_block is None:
        hw_tile = max(128, (budget // (5 * C * itemsize)) // 128 * 128)
    else:
        hw_tile = max(128, (int(hw_block) // 128) * 128)
    hw_tile = min(hw_tile, _cdiv(HW, 128) * 128)
    num_hw = _cdiv(HW, hw_tile)
    HWp = num_hw * hw_tile
    if HWp != HW:
        # Zero padding keeps the pooled sum exact (w1 carries the true 1/HW);
        # padded output columns are sliced off below.
        x_flat = jnp.pad(x_flat, ((0, 0), (0, 0), (0, HWp - HW)))
    # TODO(synk): add a channel-chunked variant for the (rare) case where even
    # a (1, C, 128) block exceeds the VMEM budget.

    # Pass 1: pooled sums, accumulated across HW chunks.
    pooled = pl.pallas_call(
        _pool_kernel,
        out_shape=jax.ShapeDtypeStruct((B, C, 1), jnp.float32),
        grid_spec=pltpu.PrefetchScalarGridSpec(
            num_scalar_prefetch=0,
            grid=(B, num_hw),
            in_specs=[pl.BlockSpec((1, C, hw_tile), lambda i, j: (i, 0, j))],
            out_specs=pl.BlockSpec((1, C, 1), lambda i, j: (i, 0, 0)),
        ),
        compiler_params=pltpu.CompilerParams(
            dimension_semantics=("parallel", "arbitrary"),
            vmem_limit_bytes=vmem_limit,
        ),
    )(x_flat)

    # Tiny excitation kernel on the (B, C) pooled matrix.
    gates2d = pl.pallas_call(
        _excite_kernel,
        out_shape=jax.ShapeDtypeStruct((B, C), jnp.float32),
        grid_spec=pltpu.PrefetchScalarGridSpec(
            num_scalar_prefetch=0,
            grid=(1,),
            in_specs=[
                pl.BlockSpec((B, C), lambda i: (0, 0)),
                pl.BlockSpec((C, Cr), lambda i: (0, 0)),
                pl.BlockSpec((Cr, C), lambda i: (0, 0)),
            ],
            out_specs=pl.BlockSpec((B, C), lambda i: (0, 0)),
        ),
        compiler_params=pltpu.CompilerParams(
            dimension_semantics=("arbitrary",),
            vmem_limit_bytes=vmem_limit,
        ),
    )(pooled[:, :, 0], w1_scaled, w2f)
    gates = gates2d[:, :, None]                          # (B, C, 1)

    # Pass 2: re-read x in HW chunks and apply the gate.
    out_flat = pl.pallas_call(
        _scale_kernel,
        out_shape=jax.ShapeDtypeStruct((B, C, HWp), x.dtype),
        grid_spec=pltpu.PrefetchScalarGridSpec(
            num_scalar_prefetch=0,
            grid=(B, num_hw),
            in_specs=[
                pl.BlockSpec((1, C, hw_tile), lambda i, j: (i, 0, j)),
                pl.BlockSpec((1, C, 1), lambda i, j: (i, 0, 0)),
            ],
            out_specs=pl.BlockSpec((1, C, hw_tile), lambda i, j: (i, 0, j)),
        ),
        compiler_params=pltpu.CompilerParams(
            dimension_semantics=("parallel", "parallel"),
            vmem_limit_bytes=vmem_limit,
        ),
    )(x_flat, gates)

    if HWp != HW:
        out_flat = out_flat[:, :, :HW]
    return out_flat.reshape(B, C, H, W)


se_layer_jit = jax.jit(se_layer, static_argnames=("force_two_pass", "hw_block"))


def _reference(x, w1, w2):
    # Pure-JAX reference of the PyTorch forward.
    y = jnp.mean(x, axis=(2, 3))                 # (B, C)
    y = jnp.maximum(y @ w1, 0.0)                 # (B, Cr)
    y = jax.nn.sigmoid(y @ w2)                   # (B, C)
    return x * y[:, :, None, None]


if __name__ == "__main__":
    B, C, H, W = 2, 64, 16, 16
    reduction = 16
    Cr = C // reduction

    key = jax.random.PRNGKey(0)
    kx, k1, k2, kx2 = jax.random.split(key, 4)

    # Weights kept in "y @ W" (transposed-vs-PyTorch) orientation.
    w1 = jax.random.normal(k1, (C, Cr), dtype=jnp.float32) * 0.1
    w2 = jax.random.normal(k2, (Cr, C), dtype=jnp.float32) * 0.1

    # Case 1: single-pass fused kernel (HW multiple of 128, >=2 grid steps).
    x = jax.random.normal(kx, (B, C, H, W), dtype=jnp.float32)
    out = se_layer_jit(x, w1, w2)
    jax.block_until_ready(out)
    ref = _reference(x, w1, w2)
    assert out.shape == (B, C, H, W)
    assert jnp.allclose(out, ref, atol=1e-5, rtol=1e-5)

    # Case 2: forced two-pass (HW-chunked) fallback on the same input.
    out2 = se_layer_jit(x, w1, w2, force_two_pass=True, hw_block=128)
    jax.block_until_ready(out2)
    assert jnp.allclose(out2, ref, atol=1e-5, rtol=1e-5)

    # Case 3: ragged spatial size (HW = 120, not a multiple of 128), both paths.
    xr = jax.random.normal(kx2, (B, C, 10, 12), dtype=jnp.float32)
    refr = _reference(xr, w1, w2)
    outr1 = se_layer_jit(xr, w1, w2)
    outr2 = se_layer_jit(xr, w1, w2, force_two_pass=True, hw_block=128)
    jax.block_until_ready((outr1, outr2))
    assert jnp.allclose(outr1, refr, atol=1e-5, rtol=1e-5)
    assert jnp.allclose(outr2, refr, atol=1e-5, rtol=1e-5)

    print("KERNEL_OK")
</pallas_src>

<mosaic_0001>
module attributes {stable_mosaic.version = 11 : i64} {
  func.func @_se_kernel(%arg0: i32, %arg1: memref<1x64x256xf32, #tpu.memory_space<vmem>>, %arg2: memref<64x4xf32, #tpu.memory_space<vmem>>, %arg3: memref<4x64xf32, #tpu.memory_space<vmem>>, %arg4: memref<1x64x256xf32, #tpu.memory_space<vmem>>) attributes {dimension_semantics = [#tpu.dimension_semantics<parallel>], iteration_bounds = array<i64: 2>, scalar_prefetch = 0 : i64, scratch_operands = 0 : i64, tpu.core_type = #tpu.core_type<tc>, window_params = [{transform_indices = @transform_0, window_bounds = array<i64: 1, 64, 256>}, {pipeline_mode = #tpu.pipeline_mode<synchronous>, transform_indices = @transform_1, window_bounds = array<i64: 64, 4>}, {pipeline_mode = #tpu.pipeline_mode<synchronous>, transform_indices = @transform_2, window_bounds = array<i64: 4, 64>}, {transform_indices = @transform_3, window_bounds = array<i64: 1, 64, 256>}]} {
    %c0 = arith.constant 0 : index
    %c0_0 = arith.constant 0 : index
    %c0_1 = arith.constant 0 : index
    %0 = vector.load %arg1[%c0, %c0_0, %c0_1] : memref<1x64x256xf32, #tpu.memory_space<vmem>>, vector<1x64x256xf32>
    %cst = arith.constant dense<0.000000e+00> : vector<1x64xf32>
    %1 = vector.multi_reduction <add>, %0, %cst [2] : vector<1x64x256xf32> to vector<1x64xf32>
    %c0_2 = arith.constant 0 : index
    %c0_3 = arith.constant 0 : index
    %2 = vector.load %arg2[%c0_2, %c0_3] : memref<64x4xf32, #tpu.memory_space<vmem>>, vector<64x4xf32>
    %cst_4 = arith.constant dense<0.000000e+00> : vector<1x4xf32>
    %3 = tpu.matmul %1, %2, %cst_4 {dimension_numbers = #tpu.dot_dimension_numbers<[1], [0], [0], [1], [0, 0, 1, 1], [], []>} : vector<1x64xf32>, vector<64x4xf32>, vector<1x4xf32> -> vector<1x4xf32>
    %cst_5 = arith.constant 0.000000e+00 : f32
    %4 = vector.broadcast %cst_5 : f32 to vector<1x4xf32>
    %5 = arith.maximumf %3, %4 : vector<1x4xf32>
    %c0_6 = arith.constant 0 : index
    %c0_7 = arith.constant 0 : index
    %6 = vector.load %arg3[%c0_6, %c0_7] : memref<4x64xf32, #tpu.memory_space<vmem>>, vector<4x64xf32>
    %cst_8 = arith.constant dense<0.000000e+00> : vector<1x64xf32>
    %7 = tpu.matmul %5, %6, %cst_8 {dimension_numbers = #tpu.dot_dimension_numbers<[1], [0], [0], [1], [0, 0, 1, 1], [], []>} : vector<1x4xf32>, vector<4x64xf32>, vector<1x64xf32> -> vector<1x64xf32>
    %8 = arith.negf %7 : vector<1x64xf32>
    %9 = math.exp %8 : vector<1x64xf32>
    %cst_9 = arith.constant 1.000000e+00 : f32
    %10 = vector.broadcast %cst_9 : f32 to vector<1x64xf32>
    %11 = arith.addf %10, %9 : vector<1x64xf32>
    %12 = arith.divf %10, %11 : vector<1x64xf32>
    %13 = vector.shape_cast %12 : vector<1x64xf32> to vector<1x64x1xf32>
    %14 = vector.broadcast %13 : vector<1x64x1xf32> to vector<1x64x256xf32>
    %15 = arith.mulf %0, %14 : vector<1x64x256xf32>
    %c0_10 = arith.constant 0 : index
    %c0_11 = arith.constant 0 : index
    %c0_12 = arith.constant 0 : index
    %16 = vector.load %arg4[%c0_10, %c0_11, %c0_12] : memref<1x64x256xf32, #tpu.memory_space<vmem>>, vector<1x64x256xf32>
    tpu.vector_store %arg4[%c0_10, %c0_11, %c0_12], %15 {strides = array<i32>} : memref<1x64x256xf32, #tpu.memory_space<vmem>>, vector<1x64x256xf32>,
    return
  }
  func.func @transform_0(%arg0: i32) -> (i32, i32, i32) {
    %c0_i32 = arith.constant 0 : i32
    %c0_i32_0 = arith.constant 0 : i32
    %c0_i32_1 = arith.constant 0 : i32
    return %arg0, %c0_i32, %c0_i32_0 : i32, i32, i32
  }
  func.func @transform_1(%arg0: i32) -> (i32, i32) {
    %c0_i32 = arith.constant 0 : i32
    %c0_i32_0 = arith.constant 0 : i32
    %c0_i32_1 = arith.constant 0 : i32
    return %c0_i32, %c0_i32_0 : i32, i32
  }
  func.func @transform_2(%arg0: i32) -> (i32, i32) {
    %c0_i32 = arith.constant 0 : i32
    %c0_i32_0 = arith.constant 0 : i32
    %c0_i32_1 = arith.constant 0 : i32
    return %c0_i32, %c0_i32_0 : i32, i32
  }
  func.func @transform_3(%arg0: i32) -> (i32, i32, i32) {
    %c0_i32 = arith.constant 0 : i32
    %c0_i32_0 = arith.constant 0 : i32
    %c0_i32_1 = arith.constant 0 : i32
    return %arg0, %c0_i32, %c0_i32_0 : i32, i32, i32
  }
}

</mosaic_0001>

<llo_original>
// kernel: se_layer.1
$region0: #{se_layer.1}
  #allocation0 [shape = 'u32[]', space=smem, size = 0x4, offset = 0x4, fixed_abs, tag = 'smem constant byte address 0x4 - core index']
  #allocation1 [shape = 'u32[72,128]{1,0:T(1,128)}', space=vmem, size = 0x9000, scoped, tag = 'internal scratch']
  %s0 = inlined_call_operand.vmem [shape: f32[2,64,256], index: 0, kind: input, shape index: {}]
  %s1 = inlined_call_operand.vmem [shape: f32[64,4], index: 1, kind: input, shape index: {}]
  %s2 = inlined_call_operand.vmem [shape: f32[4,64], index: 2, kind: input, shape index: {}]
  %s3 = inlined_call_operand.vmem [shape: f32[2,64,256], index: 3, kind: output, shape index: {}]
  %s4 = sld [smem:[#allocation0]]
  $region45: #{se_layer.1} parent=0
    _
  %s6 = ssub.s32 1, %s4
  %s7 = scalar_select 0, %s6, %s4
  loop: start=0, step=1, limit=4
  $region2: #{se_layer.1} parent=0 // loop_pre_header
    _
  $region3: #{se_layer.1} parent=0 // loop_header
    %s9 = sphi 0, %s13
    %p10 = scmp.ge.s32.totalorder %s9, 4
    %s19 = sphi 0, %s21
    %s22 = sphi 0, %s19
    %s23 = sphi 0, %s22
    %s39 = sphi 0, %s23
    %s43 = sphi 0, %s43
    %s45 = sphi 0, %s43
    %s46 = sphi 0, %s45
    %s60 = sphi 0, %s46
    %s64 = sphi 0, %s64
    %s66 = sphi 0, %s64
    %s67 = sphi 0, %s66
    %s81 = sphi 0, %s67
    %s87 = sphi 0, %s89
    %s90 = sphi 0, %s87
    %s91 = sphi 0, %s90
    %s107 = sphi 0, %s91
  $region4: #{se_layer.1} parent=0 // loop_header_branch
    %12 = sbr.rel (%p10) target = $region8
  $region5: #{se_layer.1} parent=0 // loop_body
    %s14 = ssub.s32 %s9, 1
    %s15 = ssub.s32 %s9, 2
    %s16 = sadd.s32 %s9, 1
    %s17 = ssub.s32 %s9, %s16
    %p18 = scmp.eq.s32.totalorder %s17, 0
    %s20 = sadd.s32 %s19, 1
    %s21 = scalar_select %p18, %s19, %s20
    %p24 = pneg %p18
    %p25 = scmp.eq.s32.totalorder %s9, 1
    %p26 = por %p24, %p25
    %p27 = scmp.ne.s32.totalorder %s19, %s22
    %p28 = scmp.eq.s32.totalorder %s9, 0
    %p29 = por %p27, %p28
    %p30 = scmp.ne.s32.totalorder %s19, %s22
    %p31 = scmp.eq.s32.totalorder %s14, 1
    %p32 = por %p30, %p31
    %p33 = scmp.ne.s32.totalorder %s22, %s23
    %p34 = scmp.eq.s32.totalorder %s14, 0
    %p35 = por %p33, %p34
    %p36 = scmp.ne.s32.totalorder %s22, %s23
    %p37 = scmp.eq.s32.totalorder %s15, 1
    %p38 = por %p36, %p37
    %p40 = scmp.ne.s32.totalorder %s23, %s39
    %p41 = scmp.eq.s32.totalorder %s15, 0
    %p42 = por %p40, %p41
    %s44 = sadd.s32 %s43, 1
    %p47 = scmp.eq.s32.totalorder %s9, 1
    %p48 = scmp.ne.s32.totalorder %s43, %s45
    %p49 = scmp.eq.s32.totalorder %s9, 0
    %p50 = por %p48, %p49
    %p51 = scmp.ne.s32.totalorder %s43, %s45
    %p52 = scmp.eq.s32.totalorder %s14, 1
    %p53 = por %p51, %p52
    %p54 = scmp.ne.s32.totalorder %s45, %s46
    %p55 = scmp.eq.s32.totalorder %s14, 0
    %p56 = por %p54, %p55
    %p57 = scmp.ne.s32.totalorder %s45, %s46
    %p58 = scmp.eq.s32.totalorder %s15, 1
    %p59 = por %p57, %p58
    %p61 = scmp.ne.s32.totalorder %s46, %s60
    %p62 = scmp.eq.s32.totalorder %s15, 0
    %p63 = por %p61, %p62
    %s65 = sadd.s32 %s64, 1
    %p68 = scmp.eq.s32.totalorder %s9, 1
    %p69 = scmp.ne.s32.totalorder %s64, %s66
    %p70 = scmp.eq.s32.totalorder %s9, 0
    %p71 = por %p69, %p70
    %p72 = scmp.ne.s32.totalorder %s64, %s66
    %p73 = scmp.eq.s32.totalorder %s14, 1
    %p74 = por %p72, %p73
    %p75 = scmp.ne.s32.totalorder %s66, %s67
    %p76 = scmp.eq.s32.totalorder %s14, 0
    %p77 = por %p75, %p76
    %p78 = scmp.ne.s32.totalorder %s66, %s67
    %p79 = scmp.eq.s32.totalorder %s15, 1
    %p80 = por %p78, %p79
    %p82 = scmp.ne.s32.totalorder %s67, %s81
    %p83 = scmp.eq.s32.totalorder %s15, 0
    %p84 = por %p82, %p83
    %s85 = ssub.s32 %s9, %s16
    %p86 = scmp.eq.s32.totalorder %s85, 0
    %s88 = sadd.s32 %s87, 1
    %s89 = scalar_select %p86, %s87, %s88
    %p92 = pneg %p86
    %p93 = scmp.eq.s32.totalorder %s9, 1
    %p94 = por %p92, %p93
    %p95 = scmp.ne.s32.totalorder %s87, %s90
    %p96 = scmp.eq.s32.totalorder %s9, 0
    %p97 = por %p95, %p96
    %p98 = scmp.ne.s32.totalorder %s87, %s90
    %p99 = scmp.eq.s32.totalorder %s14, 1
    %p100 = por %p98, %p99
    %p101 = scmp.ne.s32.totalorder %s90, %s91
    %p102 = scmp.eq.s32.totalorder %s14, 0
    %p103 = por %p101, %p102
    %p104 = scmp.ne.s32.totalorder %s90, %s91
    %p105 = scmp.eq.s32.totalorder %s15, 1
    %p106 = por %p104, %p105
    %p108 = scmp.ne.s32.totalorder %s91, %s107
    %p109 = scmp.eq.s32.totalorder %s15, 0
    %p110 = por %p108, %p109
    %p111 = scmp.le.s32.totalorder 1, %s9
    %p112 = scmp.lt.s32.totalorder %s9, 3
    %p113 = pnand %p111, %p112
    %p114 = pneg %p113
    // Predicated region
    $region9: #{se_layer.1} parent=5 // pred_check
      _
    $region10: #{se_layer.1} parent=5 // pred_check_branch
      %116 = sbr.rel (%p113) target = $region12
    $region11: #{se_layer.1} parent=5 // pred_region
      %s117 = ssub.s32 %s9, 1
      // Predicated region
      $region13: #{se_layer.1} parent=11 // pred_check
        %p118 = pneg %p56
      $region14: #{se_layer.1} parent=11 // pred_check_branch
        %120 = sbr.rel (%p118) target = $region16
      $region15: #{se_layer.1} parent=11 // pred_region
        _
      $region16: #{se_layer.1} parent=11 // pred_fallthru
        _
      // Predicated region
      $region17: #{se_layer.1} parent=11 // pred_check
        %p121 = pneg %p77
      $region18: #{se_layer.1} parent=11 // pred_check_branch
        %123 = sbr.rel (%p121) target = $region20
      $region19: #{se_layer.1} parent=11 // pred_region
        _
      $region20: #{se_layer.1} parent=11 // pred_fallthru
        _
    $region12: #{se_layer.1} parent=5 // pred_fallthru
      _
    %p124 = scmp.lt.s32.totalorder %s9, 2
    // Predicated region
    $region21: #{se_layer.1} parent=5 // pred_check
      %p125 = pneg %p124
    $region22: #{se_layer.1} parent=5 // pred_check_branch
      %127 = sbr.rel (%p125) target = $region24
    $region23: #{se_layer.1} parent=5 // pred_region
      // Predicated region
      $region25: #{se_layer.1} parent=23 // pred_check
        %p128 = pneg %p29
      $region26: #{se_layer.1} parent=23 // pred_check_branch
        %130 = sbr.rel (%p128) target = $region28
      $region27: #{se_layer.1} parent=23 // pred_region
        %p131 = scmp.lt.s32.totalorder %s9, 1
        %s132 = scalar_select %p131, %s9, 1
        %s133 = smul.addr %s132, 16
        %s134 = smul.addr %s133, 8
        %s135 = scalar_lea.vmem %s0, %s134
      $region28: #{se_layer.1} parent=23 // pred_fallthru
        _
    $region24: #{se_layer.1} parent=5 // pred_fallthru
      _
    %p136 = scmp.le.s32.totalorder 1, %s9
    %p137 = scmp.lt.s32.totalorder %s9, 3
    %p138 = pnand %p136, %p137
    %p139 = pneg %p138
    // Predicated region
    $region29: #{se_layer.1} parent=5 // pred_check
      _
    $region30: #{se_layer.1} parent=5 // pred_check_branch
      %141 = sbr.rel (%p138) target = $region32
    $region31: #{se_layer.1} parent=5 // pred_region
      %s142 = ssub.s32 %s9, 1
      %p143 = scmp.lt.s32.totalorder %s14, 1
      %s144 = scalar_select %p143, %s14, 1
      %s145 = smul.addr %s144, 16
      %s146 = smul.addr %s145, 8
      %s147 = scalar_lea.vmem %s0, %s146
      %p148 = pneg %p35
      %p149 = pneg %p32
      %p150 = pneg %p56
      %p151 = pneg %p53
      %p152 = pneg %p77
      %p153 = pneg %p74
      %p154 = pneg %p103
      %p155 = pneg %p100
      %p156 = scmp.lt.s32.totalorder %s14, 1
      %s157 = scalar_select %p156, %s14, 1
      %s158 = smul.addr %s157, 16
      %s159 = smul.addr %s158, 8
      %s160 = scalar_lea.vmem %s3, %s159
      %p161 = scmp.lt.s32.totalorder %s14, 1
      %s162 = scalar_select %p161, %s14, 1
      %s163 = smul.addr %s162, 16
      %s164 = smul.addr %s163, 8
      %s165 = scalar_lea.vmem %s0, %s164
      %p166 = scmp.lt.s32.totalorder %s14, 1
      %s167 = scalar_select %p166, %s14, 1
      %s168 = smul.addr %s167, 16
      %s169 = smul.addr %s168, 8
      %s170 = scalar_lea.vmem %s3, %s169
      %v171 = vld [vmem:[%s165] sm:$0xff]
      %v172 = vld [vmem:[%s165 + $0x8] sm:$0xff]
      %v173 = vld [vmem:[%s165 + $0x10] sm:$0xff]
      %v174 = vld [vmem:[%s165 + $0x18] sm:$0xff]
      %v175 = vld [vmem:[%s165 + $0x20] sm:$0xff]
      %v176 = vld [vmem:[%s165 + $0x28] sm:$0xff]
      %v177 = vld [vmem:[%s165 + $0x30] sm:$0xff]
      %v178 = vld [vmem:[%s165 + $0x38] sm:$0xff]
      %v179 = vld [vmem:[%s165 + $0x40] sm:$0xff]
      %v180 = vld [vmem:[%s165 + $0x48] sm:$0xff]
      %v181 = vld [vmem:[%s165 + $0x50] sm:$0xff]
      %v182 = vld [vmem:[%s165 + $0x58] sm:$0xff]
      %v183 = vld [vmem:[%s165 + $0x60] sm:$0xff]
      %v184 = vld [vmem:[%s165 + $0x68] sm:$0xff]
      %v185 = vld [vmem:[%s165 + $0x70] sm:$0xff]
      %v186 = vld [vmem:[%s165 + $0x78] sm:$0xff]
      %v187 = vadd.f32 %v171, %v172
      %188 = vadd.xlane.f32.xlu0 %v187
      %v189 = vpop.xlane.xlu0 %188
      %v190 = vadd.f32 %v173, %v174
      %191 = vadd.xlane.f32.xlu0 %v190
      %v192 = vpop.xlane.xlu0 %191
      %v193 = vadd.f32 %v175, %v176
      %194 = vadd.xlane.f32.xlu0 %v193
      %v195 = vpop.xlane.xlu0 %194
      %v196 = vadd.f32 %v177, %v178
      %197 = vadd.xlane.f32.xlu0 %v196
      %v198 = vpop.xlane.xlu0 %197
      %v199 = vadd.f32 %v179, %v180
      %200 = vadd.xlane.f32.xlu0 %v199
      %v201 = vpop.xlane.xlu0 %200
      %v202 = vadd.f32 %v181, %v182
      %203 = vadd.xlane.f32.xlu0 %v202
      %v204 = vpop.xlane.xlu0 %203
      %v205 = vadd.f32 %v183, %v184
      %206 = vadd.xlane.f32.xlu0 %v205
      %v207 = vpop.xlane.xlu0 %206
      %v208 = vadd.f32 %v185, %v186
      %209 = vadd.xlane.f32.xlu0 %v208
      %v210 = vpop.xlane.xlu0 %209
      %v211 = vld [vmem:[%s1] sm:$0xff]
      %v212 = vld [vmem:[%s1 + $0x8] sm:$0xff]
      %v213 = vld [vmem:[%s1 + $0x10] sm:$0xff]
      %v214 = vld [vmem:[%s1 + $0x18] sm:$0xff]
      %v215 = vld [vmem:[%s1 + $0x20] sm:$0xff]
      %v216 = vld [vmem:[%s1 + $0x28] sm:$0xff]
      %v217 = vld [vmem:[%s1 + $0x30] sm:$0xff]
      %v218 = vld [vmem:[%s1 + $0x38] sm:$0xff]
      %v227 = vlaneseq
      %v228 = vand.u32 %v227, 127
      %v229 = vperm.slane %v189, %v228
      %v230 = vadd.s32 %v228, 4294967288
      %v231 = vperm.slane %v192, %v230
      %vm232 = vcmask 130112
      %v233 = vsel %vm232, %v231, %v229
      %v234 = vadd.s32 %v228, 4294967280
      %v235 = vperm.slane %v195, %v234
      %vm236 = vcmask 195712
      %v237 = vsel %vm236, %v235, %v233
      %v238 = vadd.s32 %v228, 4294967272
      %v239 = vperm.slane %v198, %v238
      %vm240 = vcmask 261312
      %v241 = vsel %vm240, %v239, %v237
      %v242 = vadd.s32 %v228, 4294967264
      %v243 = vperm.slane %v201, %v242
      %vm244 = vcmask 326912
      %v245 = vsel %vm244, %v243, %v241
      %v246 = vadd.s32 %v228, 4294967256
      %v247 = vperm.slane %v204, %v246
      %vm248 = vcmask 392512
      %v249 = vsel %vm248, %v247, %v245
      %v250 = vadd.s32 %v228, 4294967248
      %v251 = vperm.slane %v207, %v250
      %vm252 = vcmask 458112
      %v253 = vsel %vm252, %v251, %v249
      %v254 = vadd.s32 %v228, 4294967240
      %v255 = vperm.slane %v210, %v254
      %vm256 = vcmask 523712
      %v257 = vsel %vm256, %v255, %v253
      %vm258 = vcmask 523264
      %v259 = vsel %vm258, %v257, 0
      %261 = vmatpush.msra.mxu0 0.0
      %262 = vmatpush.msra.mxu0 0.0
      %263 = vmatpush.msra.mxu0 0.0
      %264 = vmatpush.msra.mxu0 0.0
      %265 = vmatpush.msra.mxu0 0.0
      %266 = vmatpush.msra.mxu0 0.0
      %267 = vmatpush.msra.mxu0 0.0
      %268 = vmatpush.msra.mxu0 0.0
      %269 = vmatpush.msra.mxu0 %v218
      %270 = vmatpush.msra.mxu0 %v217
      %271 = vmatpush.msra.mxu0 %v216
      %272 = vmatpush.msra.mxu0 %v215
      %273 = vmatpush.msra.mxu0 %v214
      %274 = vmatpush.msra.mxu0 %v213
      %275 = vmatpush.msra.mxu0 %v212
      %276 = vmatpush.msra.mxu0 %v211
      %277 = vmatmul.f32.gmra.mxu0 %v259
      %v278 = vpop.f32.mrf.mxu0
      %v279 = vadd.f32 0.0, %v278
      %280 = vdwg.mxu0
      %v281 = vmax.f32 %v279, 0.0
      %v282 = vld [vmem:[%s2] sm:$0xf]
      %vm283 = vcmask 31744
      %v285 = vsel %vm283, %v281, 0
      %vm287 = vcmask 1043456
      %v289 = vsel %vm287, %v282, 0
      %291 = vmatpush.msra.mxu0 0.0
      %292 = vmatpush.msra.mxu0 0.0
      %293 = vmatpush.msra.mxu0 0.0
      %294 = vmatpush.msra.mxu0 0.0
      %295 = vmatpush.msra.mxu0 0.0
      %296 = vmatpush.msra.mxu0 0.0
      %297 = vmatpush.msra.mxu0 0.0
      %298 = vmatpush.msra.mxu0 0.0
      %299 = vmatpush.msra.mxu0 0.0
      %300 = vmatpush.msra.mxu0 0.0
      %301 = vmatpush.msra.mxu0 0.0
      %302 = vmatpush.msra.mxu0 0.0
      %303 = vmatpush.msra.mxu0 0.0
      %304 = vmatpush.msra.mxu0 0.0
      %305 = vmatpush.msra.mxu0 0.0
      %306 = vmatpush.msra.mxu0 %v289
      %307 = vmatmul.f32.gmra.mxu0 %v285
      %v308 = vpop.f32.mrf.mxu0
      %v309 = vadd.f32 0.0, %v308
      %310 = vdwg.mxu0
      %v311 = vxor.u32 %v309, 2147483648
      %v312 = vmul.f32 %v311, 1.442695
      %v313 = vpow.pop %v312
      %v314 = vadd.f32 %v313, 1.0
      %v315 = vrcp.pop %v314
      %v316 = vmul.f32 %v314, %v315
      %v317 = vsub.f32 1.0, %v316
      %v318 = vmul.f32 %v315, %v317
      %v319 = vadd.f32 %v315, %v318
      %vm320 = vweird.f32 %v314
      %vm321 = vweird.f32 %v315
      %vm322 = vmor %vm320, %vm321
      %v323 = vsel %vm322, %v315, %v319
      %v324 = vand.u32 2147483647, %v314
      %vm325 = vcmp.eq.f32.partialorder %v324, 8.507059e+37
      %v326 = vand.u32 %v314, 2147483648
      %v327 = vor.u32 1.1754944e-38, %v326
      %v328 = vsel %vm325, %v327, %v323
      %v329 = vmul.f32 1.0, %v328
      %v330 = vperm.slane %v329, 0
      %v331 = vlaneseq
      %v332 = vshrl.u32 %v331, 7
      %334 = vset.pattern.permute.xlu0 %v332
      %335 = vperm.xlu0 %334, %v330
      %v336 = vpop.permute.xlu0 %335
      %v337 = vlaneseq
      %v338 = vshrl.u32 %v337, 7
      %v339 = vadd.s32 %v338, 8
      %340 = vset.pattern.permute.xlu0 %v339
      %341 = vperm.xlu0 %340, %v330
      %v342 = vpop.permute.xlu0 %341
      %v343 = vlaneseq
      %v344 = vshrl.u32 %v343, 7
      %v345 = vadd.s32 %v344, 16
      %346 = vset.pattern.permute.xlu0 %v345
      %347 = vperm.xlu0 %346, %v330
      %v348 = vpop.permute.xlu0 %347
      %v349 = vlaneseq
      %v350 = vshrl.u32 %v349, 7
      %v351 = vadd.s32 %v350, 24
      %352 = vset.pattern.permute.xlu0 %v351
      %353 = vperm.xlu0 %352, %v330
      %v354 = vpop.permute.xlu0 %353
      %v355 = vlaneseq
      %v356 = vshrl.u32 %v355, 7
      %v357 = vadd.s32 %v356, 32
      %358 = vset.pattern.permute.xlu0 %v357
      %359 = vperm.xlu0 %358, %v330
      %v360 = vpop.permute.xlu0 %359
      %v361 = vlaneseq
      %v362 = vshrl.u32 %v361, 7
      %v363 = vadd.s32 %v362, 40
      %364 = vset.pattern.permute.xlu0 %v363
      %365 = vperm.xlu0 %364, %v330
      %v366 = vpop.permute.xlu0 %365
      %v367 = vlaneseq
      %v368 = vshrl.u32 %v367, 7
      %v369 = vadd.s32 %v368, 48
      %370 = vset.pattern.permute.xlu0 %v369
      %371 = vperm.xlu0 %370, %v330
      %v372 = vpop.permute.xlu0 %371
      %v373 = vlaneseq
      %v374 = vshrl.u32 %v373, 7
      %v375 = vadd.s32 %v374, 56
      %376 = vset.pattern.permute.xlu0 %v375
      %377 = vperm.xlu0 %376, %v330
      %v378 = vpop.permute.xlu0 %377
      %v379 = vmul.f32 %v171, %v336
      %v380 = vmul.f32 %v172, %v336
      %v381 = vmul.f32 %v173, %v342
      %v382 = vmul.f32 %v174, %v342
      %v383 = vmul.f32 %v175, %v348
      %v384 = vmul.f32 %v176, %v348
      %v385 = vmul.f32 %v177, %v354
      %v386 = vmul.f32 %v178, %v354
      %v387 = vmul.f32 %v179, %v360
      %v388 = vmul.f32 %v180, %v360
      %v389 = vmul.f32 %v181, %v366
      %v390 = vmul.f32 %v182, %v366
      %v391 = vmul.f32 %v183, %v372
      %v392 = vmul.f32 %v184, %v372
      %v393 = vmul.f32 %v185, %v378
      %v394 = vmul.f32 %v186, %v378
      %395 = vst [vmem:[%s170] sm:$0xff] %v379
      %396 = vst [vmem:[%s170 + $0x8] sm:$0xff] %v380
      %397 = vst [vmem:[%s170 + $0x10] sm:$0xff] %v381
      %398 = vst [vmem:[%s170 + $0x18] sm:$0xff] %v382
      %399 = vst [vmem:[%s170 + $0x20] sm:$0xff] %v383
      %400 = vst [vmem:[%s170 + $0x28] sm:$0xff] %v384
      %401 = vst [vmem:[%s170 + $0x30] sm:$0xff] %v385
      %402 = vst [vmem:[%s170 + $0x38] sm:$0xff] %v386
      %403 = vst [vmem:[%s170 + $0x40] sm:$0xff] %v387
      %404 = vst [vmem:[%s170 + $0x48] sm:$0xff] %v388
      %405 = vst [vmem:[%s170 + $0x50] sm:$0xff] %v389
      %406 = vst [vmem:[%s170 + $0x58] sm:$0xff] %v390
      %407 = vst [vmem:[%s170 + $0x60] sm:$0xff] %v391
      %408 = vst [vmem:[%s170 + $0x68] sm:$0xff] %v392
      %409 = vst [vmem:[%s170 + $0x70] sm:$0xff] %v393
      %410 = vst [vmem:[%s170 + $0x78] sm:$0xff] %v394
      %p411 = scmp.lt.s32.totalorder %s14, 1
      %s412 = scalar_select %p411, %s14, 1
      %s413 = smul.addr %s412, 16
      %s414 = smul.addr %s413, 8
      %s415 = scalar_lea.vmem %s3, %s414
      // Predicated region
      $region33: #{se_layer.1} parent=31 // pred_check
        %p416 = pneg %p100
      $region34: #{se_layer.1} parent=31 // pred_check_branch
        %418 = sbr.rel (%p416) target = $region36
      $region35: #{se_layer.1} parent=31 // pred_region
        _
      $region36: #{se_layer.1} parent=31 // pred_fallthru
        _
    $region32: #{se_layer.1} parent=5 // pred_fallthru
      _
    %p419 = scmp.le.s32.totalorder 2, %s9
    // Predicated region
    $region37: #{se_layer.1} parent=5 // pred_check
      %p420 = pneg %p419
    $region38: #{se_layer.1} parent=5 // pred_check_branch
      %422 = sbr.rel (%p420) target = $region40
    $region39: #{se_layer.1} parent=5 // pred_region
      %s423 = ssub.s32 %s9, 2
      // Predicated region
      $region41: #{se_layer.1} parent=39 // pred_check
        %p424 = pneg %p106
      $region42: #{se_layer.1} parent=39 // pred_check_branch
        %426 = sbr.rel (%p424) target = $region44
      $region43: #{se_layer.1} parent=39 // pred_region
        %p427 = scmp.lt.s32.totalorder %s15, 1
        %s428 = scalar_select %p427, %s15, 1
        %s429 = smul.addr %s428, 16
        %s430 = smul.addr %s429, 8
        %s431 = scalar_lea.vmem %s3, %s430
      $region44: #{se_layer.1} parent=39 // pred_fallthru
        _
    $region40: #{se_layer.1} parent=5 // pred_fallthru
      _
  $region6: #{se_layer.1} parent=0 // loop_footer
    %s13 = sadd.s32 1, %s9
  $region7: #{se_layer.1} parent=0 // loop_footer_branch
    %8 = sbr.rel target = $region3
  $region8: #{se_layer.1} parent=0 // loop_exit
    _

</llo_original>
